<compile_context>
chip_gen: v5e
topology: v5e:2x2
jax: 0.10.0
libtpu: 0.0.40
codegen_flags: <defaults>
</compile_context>

<pallas_src>
import functools

import jax
import jax.numpy as jnp
from jax.experimental import pallas as pl
from jax.experimental.pallas import tpu as pltpu


def _round_up(x, m):
    return ((x + m - 1) // m) * m


def _hyper_fused_kernel(z_ref, w_ref, b_ref, o_ref, h_ref, *,
                        n_hidden_pad, z_dim, in_size):
    # Static, lane-aligned views into the packed weight / bias operands.
    w1t = w_ref[:, :n_hidden_pad]        # (z_dim, n_hidden_pad)  K-major proj1
    w2t = w_ref[:, n_hidden_pad:]        # (z_dim, n_pad)         K-major proj2
    b1 = b_ref[:, :n_hidden_pad]         # (1, n_hidden_pad)
    b2 = b_ref[:, n_hidden_pad:]         # (1, n_pad)

    # proj1 + ReLU:  (1, z_dim) @ (z_dim, n_hidden_pad) -> (1, n_hidden_pad)
    zb = z_ref[0]                        # (1, z_dim)
    h1 = jnp.dot(zb, w1t, preferred_element_type=jnp.float32)
    h1 = jnp.maximum(h1 + b1, 0.0)

    # .view(in_size, z_dim): flat row-major retile, materialized once through a
    # small VMEM scratch (static, unrolled; see NOTE at top of file).
    # TODO(synk): swap for a direct value reshape when Mosaic supports this
    # lane->sublane shape cast.
    for i in range(in_size):
        h_ref[i:i + 1, :] = h1[:, i * z_dim:(i + 1) * z_dim]

    # proj2 + ReLU: (in_size, z_dim) @ (z_dim, n_pad) -> (in_size, n_pad)
    # n_pad is a multiple of 128 -> lane-dense, unmasked output store.
    h2 = jnp.dot(h_ref[...], w2t, preferred_element_type=jnp.float32)
    o_ref[0] = jnp.maximum(h2 + b2, 0.0).astype(o_ref.dtype)


def init_hyper_module_params(key, f_size, z_dim, out_size, in_size):
    """Deterministic init mimicking torch nn.Linear default U(-1/sqrt(fan_in), +).

    Parameters are returned in the native torch layout: w (out_features, in_features).
    """
    k1, k2, k3, k4 = jax.random.split(key, 4)
    bound = 1.0 / float(jnp.sqrt(jnp.float32(z_dim)))
    w1 = jax.random.uniform(k1, (in_size * z_dim, z_dim), jnp.float32, -bound, bound)
    b1 = jax.random.uniform(k2, (in_size * z_dim,), jnp.float32, -bound, bound)
    w2 = jax.random.uniform(k3, (out_size * f_size * f_size, z_dim), jnp.float32,
                            -bound, bound)
    b2 = jax.random.uniform(k4, (out_size * f_size * f_size,), jnp.float32,
                            -bound, bound)
    return (w1, b1, w2, b2)


def prepare_hyper_params(params, f_size, z_dim, out_size, in_size):
    """One-time param prep: transpose to K-major, pad to lane-dense widths, pack.

    Done ONCE (not on the per-call critical path).  Returns (W, B) where
      W : (z_dim, n_hidden_pad + n_pad)  = [w1^T | w2^T (zero-padded)]
      B : (1,     n_hidden_pad + n_pad)  = [b1   | b2   (zero-padded)]
    """
    w1, b1, w2, b2 = params
    n_hidden = in_size * z_dim
    n_out = out_size * f_size * f_size
    n_hidden_pad = _round_up(n_hidden, 128)
    n_pad = _round_up(n_out, 128)

    w1t = jnp.pad(w1, ((0, n_hidden_pad - n_hidden), (0, 0))).T   # (z_dim, n_hidden_pad)
    w2t = jnp.pad(w2, ((0, n_pad - n_out), (0, 0))).T             # (z_dim, n_pad)
    W = jnp.concatenate([w1t, w2t], axis=1)                       # (z_dim, nh_pad+n_pad)

    b1p = jnp.pad(b1, (0, n_hidden_pad - n_hidden))
    b2p = jnp.pad(b2, (0, n_pad - n_out))
    B = jnp.concatenate([b1p, b2p]).reshape(1, n_hidden_pad + n_pad)

    return jax.block_until_ready((W, B))


@functools.partial(jax.jit, static_argnums=(2, 3, 4, 5))
def hyper_module_forward(z, prepped, f_size, z_dim, out_size, in_size):
    """z: (z_dim,) -> (out_size, in_size, f, f), or
       z: (batch, z_dim) -> (batch, out_size, in_size, f, f)  (vmapped semantics)."""
    W, B = prepped
    n_hidden = in_size * z_dim
    n_out = out_size * f_size * f_size
    n_hidden_pad = _round_up(n_hidden, 128)
    n_pad = _round_up(n_out, 128)
    n_tot = n_hidden_pad + n_pad

    single = (z.ndim == 1)
    zb = z.reshape(-1, z_dim)
    batch = zb.shape[0]
    z3 = zb.reshape(batch, 1, z_dim)

    cost = pl.CostEstimate(
        flops=batch * 2 * (z_dim * n_hidden + in_size * z_dim * n_out),
        transcendentals=0,
        bytes_accessed=4 * (W.size + B.size + batch * (z_dim + in_size * n_pad)),
    )

    kernel = functools.partial(_hyper_fused_kernel,
                               n_hidden_pad=n_hidden_pad,
                               z_dim=z_dim, in_size=in_size)

    h_final = pl.pallas_call(
        kernel,
        out_shape=jax.ShapeDtypeStruct((batch, in_size, n_pad), jnp.float32),
        grid=(batch,),
        in_specs=[
            pl.BlockSpec((1, 1, z_dim), lambda b: (b, 0, 0)),      # per-batch z
            pl.BlockSpec((z_dim, n_tot), lambda b: (0, 0)),        # weights, VMEM-resident
            pl.BlockSpec((1, n_tot), lambda b: (0, 0)),            # biases, VMEM-resident
        ],
        out_specs=pl.BlockSpec((1, in_size, n_pad), lambda b: (b, 0, 0)),
        scratch_shapes=[pltpu.VMEM((in_size, z_dim), jnp.float32)],
        compiler_params=pltpu.CompilerParams(
            dimension_semantics=("parallel",),        # batch across v7x cores
            vmem_limit_bytes=2 * 1024 * 1024),
        cost_estimate=cost,
    )(z3, W, B)

    # Glue: drop lane padding, then torch's flat row-major .view.
    out = h_final[:, :, :n_out].reshape(batch, out_size, in_size, f_size, f_size)
    return out[0] if single else out


if __name__ == "__main__":
    # small shapes consistent with the module
    f_size, z_dim, out_size, in_size = 3, 32, 8, 8

    key = jax.random.PRNGKey(0)
    kp, kz = jax.random.split(key)
    params = init_hyper_module_params(kp, f_size, z_dim, out_size, in_size)
    prepped = prepare_hyper_params(params, f_size, z_dim, out_size, in_size)

    w1, b1, w2, b2 = params

    def reference(zv):
        h_in = jnp.maximum(zv @ w1.T + b1, 0.0).reshape(in_size, z_dim)
        h_fin = jnp.maximum(h_in @ w2.T + b2, 0.0)
        return h_fin.reshape(out_size, in_size, f_size, f_size)

    # --- single-z path (exact module semantics) ---
    z = jax.random.normal(kz, (z_dim,), jnp.float32)
    kernel = jax.block_until_ready(
        hyper_module_forward(z, prepped, f_size, z_dim, out_size, in_size))
    assert kernel.shape == (out_size, in_size, f_size, f_size)
    assert jnp.allclose(kernel, reference(z), atol=1e-5, rtol=1e-5)

    # --- batched path (amortizes launch + weight DMA; parallel on v7x) ---
    zb = jax.random.normal(jax.random.fold_in(kz, 1), (4, z_dim), jnp.float32)
    kb = jax.block_until_ready(
        hyper_module_forward(zb, prepped, f_size, z_dim, out_size, in_size))
    assert kb.shape == (4, out_size, in_size, f_size, f_size)
    for i in range(4):
        assert jnp.allclose(kb[i], reference(zb[i]), atol=1e-5, rtol=1e-5)

    print("KERNEL_OK")
</pallas_src>

<mosaic_0001>
module attributes {stable_mosaic.version = 11 : i64} {
  func.func @_hyper_fused_kernel(%arg0: i32, %arg1: memref<1x1x32xf32, #tpu.memory_space<vmem>>, %arg2: memref<32x384xf32, #tpu.memory_space<vmem>>, %arg3: memref<1x384xf32, #tpu.memory_space<vmem>>, %arg4: memref<1x8x128xf32, #tpu.memory_space<vmem>>, %arg5: memref<8x32xf32, #tpu.memory_space<vmem>>) attributes {dimension_semantics = [#tpu.dimension_semantics<parallel>], iteration_bounds = array<i64: 1>, scalar_prefetch = 0 : i64, scratch_operands = 1 : i64, tpu.core_type = #tpu.core_type<tc>, window_params = [{transform_indices = @transform_0, window_bounds = array<i64: 1, 1, 32>}, {pipeline_mode = #tpu.pipeline_mode<synchronous>, transform_indices = @transform_1, window_bounds = array<i64: 32, 384>}, {pipeline_mode = #tpu.pipeline_mode<synchronous>, transform_indices = @transform_2, window_bounds = array<i64: 1, 384>}, {transform_indices = @transform_3, window_bounds = array<i64: 1, 8, 128>}]} {
    %c0 = arith.constant 0 : index
    %c0_0 = arith.constant 0 : index
    %0 = vector.load %arg2[%c0, %c0_0] : memref<32x384xf32, #tpu.memory_space<vmem>>, vector<32x256xf32>
    %c0_1 = arith.constant 0 : index
    %c256 = arith.constant 256 : index
    %1 = vector.load %arg2[%c0_1, %c256] : memref<32x384xf32, #tpu.memory_space<vmem>>, vector<32x128xf32>
    %c0_2 = arith.constant 0 : index
    %c0_3 = arith.constant 0 : index
    %2 = vector.load %arg3[%c0_2, %c0_3] : memref<1x384xf32, #tpu.memory_space<vmem>>, vector<1x256xf32>
    %c0_4 = arith.constant 0 : index
    %c256_5 = arith.constant 256 : index
    %3 = vector.load %arg3[%c0_4, %c256_5] : memref<1x384xf32, #tpu.memory_space<vmem>>, vector<1x128xf32>
    %c0_6 = arith.constant 0 : index
    %c0_7 = arith.constant 0 : index
    %c0_8 = arith.constant 0 : index
    %4 = vector.load %arg1[%c0_6, %c0_7, %c0_8] : memref<1x1x32xf32, #tpu.memory_space<vmem>>, vector<1x1x32xf32>
    %5 = vector.shape_cast %4 : vector<1x1x32xf32> to vector<1x32xf32>
    %cst = arith.constant dense<0.000000e+00> : vector<1x256xf32>
    %6 = tpu.matmul %5, %0, %cst {dimension_numbers = #tpu.dot_dimension_numbers<[1], [0], [0], [1], [0, 0, 1, 1], [], []>} : vector<1x32xf32>, vector<32x256xf32>, vector<1x256xf32> -> vector<1x256xf32>
    %7 = arith.addf %6, %2 : vector<1x256xf32>
    %cst_9 = arith.constant 0.000000e+00 : f32
    %8 = vector.broadcast %cst_9 : f32 to vector<1x256xf32>
    %9 = arith.maximumf %7, %8 : vector<1x256xf32>
    %10 = vector.extract_strided_slice %9 {offsets = [0, 0], sizes = [1, 32], strides = [1, 1]} : vector<1x256xf32> to vector<1x32xf32>
    %c0_10 = arith.constant 0 : index
    %c0_11 = arith.constant 0 : index
    %11 = vector.load %arg5[%c0_10, %c0_11] : memref<8x32xf32, #tpu.memory_space<vmem>>, vector<1x32xf32>
    tpu.vector_store %arg5[%c0_10, %c0_11], %10 {strides = array<i32>} : memref<8x32xf32, #tpu.memory_space<vmem>>, vector<1x32xf32>,
    %12 = vector.extract_strided_slice %9 {offsets = [0, 32], sizes = [1, 32], strides = [1, 1]} : vector<1x256xf32> to vector<1x32xf32>
    %c1 = arith.constant 1 : index
    %c0_12 = arith.constant 0 : index
    %13 = vector.load %arg5[%c1, %c0_12] : memref<8x32xf32, #tpu.memory_space<vmem>>, vector<1x32xf32>
    tpu.vector_store %arg5[%c1, %c0_12], %12 {strides = array<i32>} : memref<8x32xf32, #tpu.memory_space<vmem>>, vector<1x32xf32>,
    %14 = vector.extract_strided_slice %9 {offsets = [0, 64], sizes = [1, 32], strides = [1, 1]} : vector<1x256xf32> to vector<1x32xf32>
    %c2 = arith.constant 2 : index
    %c0_13 = arith.constant 0 : index
    %15 = vector.load %arg5[%c2, %c0_13] : memref<8x32xf32, #tpu.memory_space<vmem>>, vector<1x32xf32>
    tpu.vector_store %arg5[%c2, %c0_13], %14 {strides = array<i32>} : memref<8x32xf32, #tpu.memory_space<vmem>>, vector<1x32xf32>,
    %16 = vector.extract_strided_slice %9 {offsets = [0, 96], sizes = [1, 32], strides = [1, 1]} : vector<1x256xf32> to vector<1x32xf32>
    %c3 = arith.constant 3 : index
    %c0_14 = arith.constant 0 : index
    %17 = vector.load %arg5[%c3, %c0_14] : memref<8x32xf32, #tpu.memory_space<vmem>>, vector<1x32xf32>
    tpu.vector_store %arg5[%c3, %c0_14], %16 {strides = array<i32>} : memref<8x32xf32, #tpu.memory_space<vmem>>, vector<1x32xf32>,
    %18 = vector.extract_strided_slice %9 {offsets = [0, 128], sizes = [1, 32], strides = [1, 1]} : vector<1x256xf32> to vector<1x32xf32>
    %c4 = arith.constant 4 : index
    %c0_15 = arith.constant 0 : index
    %19 = vector.load %arg5[%c4, %c0_15] : memref<8x32xf32, #tpu.memory_space<vmem>>, vector<1x32xf32>
    tpu.vector_store %arg5[%c4, %c0_15], %18 {strides = array<i32>} : memref<8x32xf32, #tpu.memory_space<vmem>>, vector<1x32xf32>,
    %20 = vector.extract_strided_slice %9 {offsets = [0, 160], sizes = [1, 32], strides = [1, 1]} : vector<1x256xf32> to vector<1x32xf32>
    %c5 = arith.constant 5 : index
    %c0_16 = arith.constant 0 : index
    %21 = vector.load %arg5[%c5, %c0_16] : memref<8x32xf32, #tpu.memory_space<vmem>>, vector<1x32xf32>
    tpu.vector_store %arg5[%c5, %c0_16], %20 {strides = array<i32>} : memref<8x32xf32, #tpu.memory_space<vmem>>, vector<1x32xf32>,
    %22 = vector.extract_strided_slice %9 {offsets = [0, 192], sizes = [1, 32], strides = [1, 1]} : vector<1x256xf32> to vector<1x32xf32>
    %c6 = arith.constant 6 : index
    %c0_17 = arith.constant 0 : index
    %23 = vector.load %arg5[%c6, %c0_17] : memref<8x32xf32, #tpu.memory_space<vmem>>, vector<1x32xf32>
    tpu.vector_store %arg5[%c6, %c0_17], %22 {strides = array<i32>} : memref<8x32xf32, #tpu.memory_space<vmem>>, vector<1x32xf32>,
    %24 = vector.extract_strided_slice %9 {offsets = [0, 224], sizes = [1, 32], strides = [1, 1]} : vector<1x256xf32> to vector<1x32xf32>
    %c7 = arith.constant 7 : index
    %c0_18 = arith.constant 0 : index
    %25 = vector.load %arg5[%c7, %c0_18] : memref<8x32xf32, #tpu.memory_space<vmem>>, vector<1x32xf32>
    tpu.vector_store %arg5[%c7, %c0_18], %24 {strides = array<i32>} : memref<8x32xf32, #tpu.memory_space<vmem>>, vector<1x32xf32>,
    %c0_19 = arith.constant 0 : index
    %c0_20 = arith.constant 0 : index
    %26 = vector.load %arg5[%c0_19, %c0_20] : memref<8x32xf32, #tpu.memory_space<vmem>>, vector<8x32xf32>
    %cst_21 = arith.constant dense<0.000000e+00> : vector<8x128xf32>
    %27 = tpu.matmul %26, %1, %cst_21 {dimension_numbers = #tpu.dot_dimension_numbers<[1], [0], [0], [1], [0, 0, 1, 1], [], []>} : vector<8x32xf32>, vector<32x128xf32>, vector<8x128xf32> -> vector<8x128xf32>
    %28 = vector.broadcast %3 : vector<1x128xf32> to vector<8x128xf32>
    %29 = arith.addf %27, %28 : vector<8x128xf32>
    %cst_22 = arith.constant 0.000000e+00 : f32
    %30 = vector.broadcast %cst_22 : f32 to vector<8x128xf32>
    %31 = arith.maximumf %29, %30 : vector<8x128xf32>
    %c0_23 = arith.constant 0 : index
    %c0_24 = arith.constant 0 : index
    %c0_25 = arith.constant 0 : index
    %32 = vector.load %arg4[%c0_23, %c0_24, %c0_25] : memref<1x8x128xf32, #tpu.memory_space<vmem>>, vector<1x8x128xf32>
    %33 = vector.shape_cast %32 : vector<1x8x128xf32> to vector<8x128xf32>
    %34 = vector.shape_cast %31 : vector<8x128xf32> to vector<1x8x128xf32>
    tpu.vector_store %arg4[%c0_23, %c0_24, %c0_25], %34 {strides = array<i32>} : memref<1x8x128xf32, #tpu.memory_space<vmem>>, vector<1x8x128xf32>,
    return
  }
  func.func @transform_0(%arg0: i32) -> (i32, i32, i32) {
    %c0_i32 = arith.constant 0 : i32
    %c0_i32_0 = arith.constant 0 : i32
    %c0_i32_1 = arith.constant 0 : i32
    return %arg0, %c0_i32, %c0_i32_0 : i32, i32, i32
  }
  func.func @transform_1(%arg0: i32) -> (i32, i32) {
    %c0_i32 = arith.constant 0 : i32
    %c0_i32_0 = arith.constant 0 : i32
    %c0_i32_1 = arith.constant 0 : i32
    return %c0_i32, %c0_i32_0 : i32, i32
  }
  func.func @transform_2(%arg0: i32) -> (i32, i32) {
    %c0_i32 = arith.constant 0 : i32
    %c0_i32_0 = arith.constant 0 : i32
    %c0_i32_1 = arith.constant 0 : i32
    return %c0_i32, %c0_i32_0 : i32, i32
  }
  func.func @transform_3(%arg0: i32) -> (i32, i32, i32) {
    %c0_i32 = arith.constant 0 : i32
    %c0_i32_0 = arith.constant 0 : i32
    %c0_i32_1 = arith.constant 0 : i32
    return %arg0, %c0_i32, %c0_i32_0 : i32, i32, i32
  }
}

</mosaic_0001>

<llo_original>
// kernel: hyper_module_forward.1
$region0: #{hyper_module_forward.1}
  #allocation0 [shape = 'u32[]', space=smem, size = 0x4, offset = 0x4, fixed_abs, tag = 'smem constant byte address 0x4 - core index']
  #allocation1 [shape = 'u32[72,128]{1,0:T(1,128)}', space=vmem, size = 0x9000, scoped, tag = 'internal scratch']
  #allocation2 [shape = 'f32[8,32]{1,0:T(8,128)}', space=vmem, size = 0x1000, scoped, tag = 'scratch operand']
  %s0 = inlined_call_operand.hbm [shape: f32[1,1,32], index: 0, kind: input, shape index: {}]
  %s1 = inlined_call_operand.hbm [shape: f32[32,384], index: 1, kind: input, shape index: {}]
  %s2 = inlined_call_operand.hbm [shape: f32[1,384], index: 2, kind: input, shape index: {}]
  %s3 = inlined_call_operand.vmem [shape: f32[1,8,128], index: 3, kind: output, shape index: {}]
  %s4 = sld [smem:[#allocation0]]
  $region34: #{hyper_module_forward.1} parent=0
    _
  %s6 = ssub.s32 1, %s4
  %s7 = scalar_select 0, %s6, %s4
  $region1: #{hyper_module_forward.1} parent=0
    #allocation3 [shape = 'u8[512]{0}', space=vmem, size = 0x400, scoped, tag = 'input window, operand 0, single buffered']
    #allocation4 [shape = 's32[1]{0}', space=sflag, size = 0x4, scoped, tag = 'scoped memory for hyper_module_forward.1']
    #allocation5 [shape = 'u8[49152]{0}', space=vmem, size = 0xc000, scoped, tag = 'input window, operand 1, single buffered']
    #allocation6 [shape = 's32[1]{0}', space=sflag, size = 0x4, scoped, tag = 'scoped memory for hyper_module_forward.1']
    #allocation7 [shape = 'u8[1536]{0}', space=vmem, size = 0x800, scoped, tag = 'input window, operand 2, single buffered']
    %8 = vsyncpa [#allocation4], 0
    %9 = vsyncpa [#allocation6], 0
    // Predicated region
    $region2: #{hyper_module_forward.1} parent=1 // pred_check
      _
    $region3: #{hyper_module_forward.1} parent=1 // pred_check_branch
      %11 = sbr.rel (0) target = $region5
    $region4: #{hyper_module_forward.1} parent=1 // pred_region
      %13 = vsyncadd [#allocation4], 0
      %s15 = sshll.u32 %s0, 4
      %s16 = int_to_ptr.hbm [resolvable:$true] %s15
      %s17 = sshll.u32 [#allocation3], 4
      %s18 = int_to_ptr.vmem [resolvable:$true] %s17
      %20 = dma.hbm_to_vmem [thread:$0]  %s16, 16, %s18, [#allocation4]
    $region5: #{hyper_module_forward.1} parent=1 // pred_fallthru
      _
    // Predicated region
    $region6: #{hyper_module_forward.1} parent=1 // pred_check
      _
    $region7: #{hyper_module_forward.1} parent=1 // pred_check_branch
      %22 = sbr.rel (0) target = $region9
    $region8: #{hyper_module_forward.1} parent=1 // pred_region
      %24 = vsyncadd [#allocation6], 0
      %s25 = sshll.u32 %s1, 4
      %s26 = int_to_ptr.hbm [resolvable:$true] %s25
      %s27 = sshll.u32 [#allocation5], 4
      %s28 = int_to_ptr.vmem [resolvable:$true] %s27
      %33 = dma.hbm_to_vmem [thread:$0]  %s26, 1536, %s28, [#allocation6], 384, 384, 24
    $region9: #{hyper_module_forward.1} parent=1 // pred_fallthru
      _
    // Predicated region
    $region10: #{hyper_module_forward.1} parent=1 // pred_check
      _
    $region11: #{hyper_module_forward.1} parent=1 // pred_check_branch
      %35 = sbr.rel (0) target = $region13
    $region12: #{hyper_module_forward.1} parent=1 // pred_region
      %37 = vsyncadd [#allocation6], 0
      %s39 = sshll.u32 %s2, 4
      %s40 = int_to_ptr.hbm [resolvable:$true] %s39
      %s41 = sshll.u32 [#allocation7], 4
      %s42 = int_to_ptr.vmem [resolvable:$true] %s41
      %44 = dma.hbm_to_vmem [thread:$0]  %s40, 48, %s42, [#allocation6]
    $region13: #{hyper_module_forward.1} parent=1 // pred_fallthru
      _
    // Predicated region
    $region14: #{hyper_module_forward.1} parent=1 // pred_check
      _
    $region15: #{hyper_module_forward.1} parent=1 // pred_check_branch
      %46 = sbr.rel (0) target = $region17
    $region16: #{hyper_module_forward.1} parent=1 // pred_region
      %48 = dma.done [#allocation4], 16
    $region17: #{hyper_module_forward.1} parent=1 // pred_fallthru
      _
    // Predicated region
    $region18: #{hyper_module_forward.1} parent=1 // pred_check
      _
    $region19: #{hyper_module_forward.1} parent=1 // pred_check_branch
      %50 = sbr.rel (0) target = $region21
    $region20: #{hyper_module_forward.1} parent=1 // pred_region
      %52 = dma.done [#allocation6], 1536
    $region21: #{hyper_module_forward.1} parent=1 // pred_fallthru
      _
    // Predicated region
    $region22: #{hyper_module_forward.1} parent=1 // pred_check
      _
    $region23: #{hyper_module_forward.1} parent=1 // pred_check_branch
      %54 = sbr.rel (0) target = $region25
    $region24: #{hyper_module_forward.1} parent=1 // pred_region
      %56 = dma.done [#allocation6], 48
    $region25: #{hyper_module_forward.1} parent=1 // pred_fallthru
      _
    %v57 = vld [vmem:[#allocation5] sm:$0xff]
    %v58 = vld [vmem:[#allocation5 + $0x8] sm:$0xff]
    %v59 = vld [vmem:[#allocation5 + $0x18] sm:$0xff]
    %v60 = vld [vmem:[#allocation5 + $0x20] sm:$0xff]
    %v61 = vld [vmem:[#allocation5 + $0x30] sm:$0xff]
    %v62 = vld [vmem:[#allocation5 + $0x38] sm:$0xff]
    %v63 = vld [vmem:[#allocation5 + $0x48] sm:$0xff]
    %v64 = vld [vmem:[#allocation5 + $0x50] sm:$0xff]
    %v65 = vld [vmem:[#allocation5 + $0x10] sm:$0xff]
    %v66 = vld [vmem:[#allocation5 + $0x28] sm:$0xff]
    %v67 = vld [vmem:[#allocation5 + $0x40] sm:$0xff]
    %v68 = vld [vmem:[#allocation5 + $0x58] sm:$0xff]
    %v69 = vld [vmem:[#allocation7] sm:$0x3]
    %v70 = vld [vmem:[#allocation7 + $0x2] sm:$0x1]
    %v71 = vld [vmem:[#allocation3] sm:$0x1]
    %v73 = vperm.slane %v69, 0
    %v74 = vperm.slane %v69, 1
    %vm77 = vcmask 261120
    %v79 = vsel %vm77, %v71, 0
    %81 = vmatpush.msra.mxu0 0.0
    %82 = vmatpush.msra.mxu0 0.0
    %83 = vmatpush.msra.mxu0 0.0
    %84 = vmatpush.msra.mxu0 0.0
    %85 = vmatpush.msra.mxu0 0.0
    %86 = vmatpush.msra.mxu0 0.0
    %87 = vmatpush.msra.mxu0 0.0
    %88 = vmatpush.msra.mxu0 0.0
    %89 = vmatpush.msra.mxu0 0.0
    %90 = vmatpush.msra.mxu0 0.0
    %91 = vmatpush.msra.mxu0 0.0
    %92 = vmatpush.msra.mxu0 0.0
    %93 = vmatpush.msra.mxu0 %v63
    %94 = vmatpush.msra.mxu0 %v61
    %95 = vmatpush.msra.mxu0 %v59
    %96 = vmatpush.msra.mxu0 %v57
    %97 = vmatmul.f32.gmra.mxu0 %v79
    %v98 = vpop.f32.mrf.mxu0
    %v99 = vadd.f32 %v73, %v98
    %100 = vdwg.mxu0
    %101 = vmatpush.msra.mxu0 0.0
    %102 = vmatpush.msra.mxu0 0.0
    %103 = vmatpush.msra.mxu0 0.0
    %104 = vmatpush.msra.mxu0 0.0
    %105 = vmatpush.msra.mxu0 0.0
    %106 = vmatpush.msra.mxu0 0.0
    %107 = vmatpush.msra.mxu0 0.0
    %108 = vmatpush.msra.mxu0 0.0
    %109 = vmatpush.msra.mxu0 0.0
    %110 = vmatpush.msra.mxu0 0.0
    %111 = vmatpush.msra.mxu0 0.0
    %112 = vmatpush.msra.mxu0 0.0
    %113 = vmatpush.msra.mxu0 %v64
    %114 = vmatpush.msra.mxu0 %v62
    %115 = vmatpush.msra.mxu0 %v60
    %116 = vmatpush.msra.mxu0 %v58
    %117 = vmatmul.f32.gmra.mxu0 %v79
    %v118 = vpop.f32.mrf.mxu0
    %v119 = vadd.f32 %v74, %v118
    %120 = vdwg.mxu0
    %v121 = vmax.f32 %v99, 0.0
    %v122 = vmax.f32 %v119, 0.0
    %vm123 = vcmask 253952
    %124 = vst.msk [vmem:[#allocation2] sm:$0x1] %vm123, %v121
    %126 = vrot.lane.b32.xlu0 %v121, 96
    %v127 = vpop.permute.xlu0 %126
    %129 = vst.msk [vmem:[#allocation2 + $0x1] sm:$0x1] %vm123, %v127
    %130 = vrot.lane.b32.xlu0 %v121, 64
    %v131 = vpop.permute.xlu0 %130
    %133 = vst.msk [vmem:[#allocation2 + $0x2] sm:$0x1] %vm123, %v131
    %134 = vrot.lane.b32.xlu0 %v121, 32
    %v135 = vpop.permute.xlu0 %134
    %137 = vst.msk [vmem:[#allocation2 + $0x3] sm:$0x1] %vm123, %v135
    %138 = vst.msk [vmem:[#allocation2 + $0x4] sm:$0x1] %vm123, %v122
    %140 = vrot.lane.b32.xlu0 %v122, 96
    %v141 = vpop.permute.xlu0 %140
    %143 = vst.msk [vmem:[#allocation2 + $0x5] sm:$0x1] %vm123, %v141
    %144 = vrot.lane.b32.xlu0 %v122, 64
    %v145 = vpop.permute.xlu0 %144
    %147 = vst.msk [vmem:[#allocation2 + $0x6] sm:$0x1] %vm123, %v145
    %148 = vrot.lane.b32.xlu0 %v122, 32
    %v149 = vpop.permute.xlu0 %148
    %151 = vst.msk [vmem:[#allocation2 + $0x7] sm:$0x1] %vm123, %v149
    %v152 = vld [vmem:[#allocation2] sm:$0xff]
    %v154 = vperm.slane %v70, 0
    %v157 = vsel %vm77, %v152, 0
    %159 = vmatpush.msra.mxu0 0.0
    %160 = vmatpush.msra.mxu0 0.0
    %161 = vmatpush.msra.mxu0 0.0
    %162 = vmatpush.msra.mxu0 0.0
    %163 = vmatpush.msra.mxu0 0.0
    %164 = vmatpush.msra.mxu0 0.0
    %165 = vmatpush.msra.mxu0 0.0
    %166 = vmatpush.msra.mxu0 0.0
    %167 = vmatpush.msra.mxu0 0.0
    %168 = vmatpush.msra.mxu0 0.0
    %169 = vmatpush.msra.mxu0 0.0
    %170 = vmatpush.msra.mxu0 0.0
    %171 = vmatpush.msra.mxu0 %v68
    %172 = vmatpush.msra.mxu0 %v67
    %173 = vmatpush.msra.mxu0 %v66
    %174 = vmatpush.msra.mxu0 %v65
    %175 = vmatmul.f32.gmra.mxu0 %v157
    %v176 = vpop.f32.mrf.mxu0
    %v177 = vadd.f32 %v154, %v176
    %178 = vdwg.mxu0
    %v179 = vmax.f32 %v177, 0.0
    %180 = vst [vmem:[%s3] sm:$0xff] %v179
    // Predicated region
    $region26: #{hyper_module_forward.1} parent=1 // pred_check
      _
    $region27: #{hyper_module_forward.1} parent=1 // pred_check_branch
      %182 = sbr.rel (0) target = $region29
    $region28: #{hyper_module_forward.1} parent=1 // pred_region
      _
    $region29: #{hyper_module_forward.1} parent=1 // pred_fallthru
      _
    // Predicated region
    $region30: #{hyper_module_forward.1} parent=1 // pred_check
      _
    $region31: #{hyper_module_forward.1} parent=1 // pred_check_branch
      %184 = sbr.rel (0) target = $region33
    $region32: #{hyper_module_forward.1} parent=1 // pred_region
      _
    $region33: #{hyper_module_forward.1} parent=1 // pred_fallthru
      _
    %185 = vsyncpa [#allocation4], 1
    %186 = vsyncpa [#allocation6], 1

</llo_original>
